<compile_context>
chip_gen: v7x
topology: tpu7x:2x2x1
jax: 0.10.0
libtpu: 0.0.40
codegen_flags: <defaults>
</compile_context>

<pallas_src>
import math
import numpy as np
import jax
import jax.numpy as jnp
from jax.experimental import pallas as pl
from jax.experimental.pallas import tpu as pltpu


def _round8(n):
    return ((n + 7) // 8) * 8


_LANE = 128                       # lane tile width
_QOFF, _KOFF, _HOFF = 0, 128, 256  # lane-tile-aligned segments of fused projection
_WPROJ_W = 384                    # fused projection width (also slab lane width)
_CP = 128                         # lane-padded class width (output block width)


# ------------------------------ packing --------------------------------------

def pack_params(params, G, B):
    """One-time host-side fusion of every operand into a single f32 slab."""
    Wq, Wk = np.asarray(params['Wq']), np.asarray(params['Wk'])
    E, D = Wq.shape
    S = params['Wh1'].shape[1]            # vdim * set_dim  (vdim == 1)
    C = params['Wh3'].shape[0]
    vdim = params['Wv3'].shape[0]
    assert vdim == 1, "summarization contraction assumes vdim == 1 (module default)"
    L = G.shape[0]
    assert G.shape == (L, L, S)
    assert E <= _LANE and D <= _LANE and S <= _LANE and C <= _CP

    BL, LS = B * L, L * S
    BP = _round8(B)

    # fused x-projection weight: x @ wproj -> [ q*1/sqrt(E) | k | v_mlp_h1_pre ]
    wproj = np.zeros((D, _WPROJ_W), np.float32)
    wproj[:, _QOFF:_QOFF + E] = Wq.T * (1.0 / math.sqrt(E))
    wproj[:, _KOFF:_KOFF + E] = Wk.T
    wproj[:, _HOFF:_HOFF + D] = np.asarray(params['Wv1']).T

    wv2t = np.asarray(params['Wv2']).T.astype(np.float32)               # (D, D)
    wv3t = np.asarray(params['Wv3']).T.astype(np.float32)               # (D, 1)

    # head weights, pre-transposed; rred folded into Wh1
    mm = np.arange(LS)
    rred = (mm[:, None] % S == np.arange(S)[None, :]).astype(np.float32)  # (LS, S)
    wh1f = rred @ np.asarray(params['Wh1']).T.astype(np.float32)          # (LS, S)
    wh2t = np.asarray(params['Wh2']).T.astype(np.float32)                 # (S, S)
    wh3p = np.zeros((S, _CP), np.float32)
    wh3p[:, :C] = np.asarray(params['Wh3']).T

    # packed biases + sigmoid offset; head-bias pad lanes at -1e30 so the
    # 128-lane softmax equals the C-class softmax exactly.
    bias = np.zeros((8, _CP), np.float32)
    bias[0, :D] = np.asarray(params['bv1']).reshape(-1)
    bias[1, :D] = np.asarray(params['bv2']).reshape(-1)
    bias[2, :1] = np.asarray(params['bv3']).reshape(-1)
    bias[3, :S] = np.asarray(params['bh1']).reshape(-1)
    bias[4, :S] = np.asarray(params['bh2']).reshape(-1)
    bias[5, :] = -1e30
    bias[5, :C] = np.asarray(params['bh3']).reshape(-1)
    bias[6, :1] = np.asarray(params['offset']).reshape(-1)

    # precomputed attention / summarization constants (no in-kernel iota)
    rr = np.arange(BL)
    mask = ((rr[:, None] // L == rr[None, :] // L)
            & (rr[:, None] != rr[None, :])).astype(np.float32)           # (BL, BL)
    rexp = ((rr[:, None] % L) == (mm[None, :] // S)).astype(np.float32)  # (BL, LS)
    g2t = np.tile(np.asarray(G).reshape(L, LS).astype(np.float32), (B, 1))  # (BL, LS)
    rowsum = np.zeros((BP, BL), np.float32)                              # per-batch row sum
    for b in range(B):
        rowsum[b, b * L:(b + 1) * L] = 1.0

    pieces = [('wproj', wproj), ('wv2t', wv2t), ('wv3t', wv3t), ('bias', bias),
              ('mask', mask), ('rexp', rexp), ('g2t', g2t), ('rowsum', rowsum),
              ('wh1f', wh1f), ('wh2t', wh2t), ('wh3p', wh3p)]
    offs, r = {}, 0
    for name, arr in pieces:                 # 8-row aligned placement
        offs[name] = r
        r += _round8(arr.shape[0])
    slab = np.zeros((r, _WPROJ_W), np.float32)
    for name, arr in pieces:
        slab[offs[name]:offs[name] + arr.shape[0], :arr.shape[1]] = arr

    meta = dict(B=B, L=L, D=D, E=E, S=S, C=C, BL=BL, LS=LS, BP=BP, offs=offs)
    return jnp.asarray(slab), meta


# ------------------------------ kernel ---------------------------------------

def simple_transformer_forward(x, slab, meta):
    B, L, D = x.shape
    assert (B, L, D) == (meta['B'], meta['L'], meta['D'])
    E, S, C = meta['E'], meta['S'], meta['C']
    BL, LS, BP = meta['BL'], meta['LS'], meta['BP']
    o = meta['offs']

    def kernel(x_ref, slab_ref, out_ref):
        xv = x_ref[...]                                               # (BL, D)

        bias = slab_ref[o['bias']:o['bias'] + 8, 0:_CP]               # (8, 128)
        bv1, bv2, bv3 = bias[0:1, 0:D], bias[1:2, 0:D], bias[2:3, 0:1]
        bh1, bh2, bh3 = bias[3:4, 0:S], bias[4:5, 0:S], bias[5:6, 0:_CP]
        off = bias[6:7, 0:1]

        # fused projection: scaled q, k and the first V-MLP layer in ONE matmul
        wproj = slab_ref[o['wproj']:o['wproj'] + D, 0:_WPROJ_W]
        proj = jnp.dot(xv, wproj, preferred_element_type=jnp.float32)  # (BL, 384)
        q = proj[:, _QOFF:_QOFF + E]                                   # 128-aligned views
        k = proj[:, _KOFF:_KOFF + E]

        # rest of the V MLP (ReLU-Linear-ReLU-Linear-Sigmoid), batched over B*L
        h = jnp.maximum(proj[:, _HOFF:_HOFF + D] + bv1, 0.0)
        wv2t = slab_ref[o['wv2t']:o['wv2t'] + D, 0:D]
        h = jnp.maximum(jnp.dot(h, wv2t, preferred_element_type=jnp.float32) + bv2, 0.0)
        wv3t = slab_ref[o['wv3t']:o['wv3t'] + D, 0:1]
        v = jax.nn.sigmoid(jnp.dot(h, wv3t, preferred_element_type=jnp.float32) + bv3)

        # block-diagonal sigmoid attention for the whole batch in one matmul
        a = jax.lax.dot_general(q, k, (((1,), (1,)), ((), ())),
                                preferred_element_type=jnp.float32)    # (BL, BL)
        mask = slab_ref[o['mask']:o['mask'] + BL, 0:BL]                # block-diag & off-diag
        attn = jax.nn.sigmoid(a + off) * mask
        w = attn * v                                                   # fold v (vdim == 1)

        # flat[b,s] = sum_{i,j} attn[b,i,j] * v[b,i] * G[i,j,s]  ('summarized')
        rexp = slab_ref[o['rexp']:o['rexp'] + BL, 0:LS]
        g2t = slab_ref[o['g2t']:o['g2t'] + BL, 0:LS]
        prod = jnp.dot(w, rexp, preferred_element_type=jnp.float32) * g2t   # (BL, LS)
        rowsum = slab_ref[o['rowsum']:o['rowsum'] + BP, 0:BL]
        colsum = jnp.dot(rowsum, prod, preferred_element_type=jnp.float32)  # (BP, LS)

        # head (rred folded into wh1f); logits lane-padded to 128 (-1e30 bias)
        wh1f = slab_ref[o['wh1f']:o['wh1f'] + LS, 0:S]
        h = jnp.maximum(jnp.dot(colsum, wh1f, preferred_element_type=jnp.float32) + bh1, 0.0)
        wh2t = slab_ref[o['wh2t']:o['wh2t'] + S, 0:S]
        h = jnp.maximum(jnp.dot(h, wh2t, preferred_element_type=jnp.float32) + bh2, 0.0)
        wh3p = slab_ref[o['wh3p']:o['wh3p'] + S, 0:_CP]
        logits = jnp.dot(h, wh3p, preferred_element_type=jnp.float32) + bh3  # (BP, 128)
        out_ref[...] = jax.nn.softmax(logits, axis=-1)                 # full lane-dense store

    vmem = pl.BlockSpec(memory_space=pltpu.MemorySpace.VMEM)
    out = pl.pallas_call(                       # grid-less: whole batch, one invocation
        kernel,
        out_shape=jax.ShapeDtypeStruct((BP, _CP), jnp.float32),
        in_specs=[vmem, vmem],                  # only 2 input DMAs: x + fused slab
        out_specs=vmem,
    )(x.reshape(BL, D), slab)
    return out[:B, :C]


# ------------------------------ glue / params --------------------------------

def init_params(key, *, seq_dim, embed_dim, set_dim, vdim, num_classes):
    keys = iter(jax.random.split(key, 32))

    def lin(out_d, in_d, bias=True):
        a = 1.0 / math.sqrt(in_d)
        w = jax.random.uniform(next(keys), (out_d, in_d), jnp.float32, -a, a)
        b = (jax.random.uniform(next(keys), (1, out_d), jnp.float32, -a, a)
             if bias else None)
        return w, b

    p = {}
    p['Wq'], _ = lin(embed_dim, seq_dim, bias=False)
    p['Wk'], _ = lin(embed_dim, seq_dim, bias=False)
    p['Wv1'], p['bv1'] = lin(seq_dim, seq_dim)
    p['Wv2'], p['bv2'] = lin(seq_dim, seq_dim)
    p['Wv3'], p['bv3'] = lin(vdim, seq_dim)
    sv = vdim * set_dim
    p['Wh1'], p['bh1'] = lin(sv, sv)
    p['Wh2'], p['bh2'] = lin(sv, sv)
    p['Wh3'], p['bh3'] = lin(num_classes, sv)
    p['offset'] = jnp.full((1, 1), -10.0, jnp.float32)   # as in __init__

    phi = {}
    phi['W1'], phi['b1'] = lin(2 * set_dim, 1)
    phi['W2'], phi['b2'] = lin(2 * set_dim, 2 * set_dim)
    phi['W3'], phi['b3'] = lin(2 * set_dim, 2 * set_dim)
    phi['W4'], phi['b4'] = lin(set_dim, 2 * set_dim)
    return p, phi


def set_phi_embedding(phi, t, L):
    """Parametric set function: SetPhi = Phi(t[:L, None]); then SetPhi[Tidx]."""
    h = jnp.maximum(t[:L, None] @ phi['W1'].T + phi['b1'], 0.0)
    h = jnp.maximum(h @ phi['W2'].T + phi['b2'], 0.0)
    h = jnp.maximum(h @ phi['W3'].T + phi['b3'], 0.0)
    set_phi = h @ phi['W4'].T + phi['b4']            # (L, set_dim)
    idx = jnp.arange(L)
    tidx = jnp.abs(idx[:, None] - idx[None, :])      # (L, L) = |i - j|
    # TODO(synk): the SetPhi[Tidx] data-dependent gather has no clean Pallas TPU
    # equivalent at this size; it is done in plain-JAX glue and packed host-side.
    return set_phi[tidx]                             # (L, L, set_dim)


def reference_forward(x, params, G):
    """Pure-JAX reference mirroring SimpleTransformer.forward (sigmoid mode)."""
    B, L, _ = x.shape
    E = params['Wq'].shape[0]
    q = jnp.einsum('bld,ed->ble', x, params['Wq'])
    k = jnp.einsum('bld,ed->ble', x, params['Wk'])
    a = jnp.einsum('bik,bjk->bij', q, k)
    attn = jax.nn.sigmoid(a / math.sqrt(E) + params['offset'][0, 0])
    attn = attn * (1.0 - jnp.eye(L))
    h = jax.nn.relu(jnp.einsum('bld,od->blo', x, params['Wv1']) + params['bv1'])
    h = jax.nn.relu(jnp.einsum('bld,od->blo', h, params['Wv2']) + params['bv2'])
    v = jax.nn.sigmoid(jnp.einsum('bld,od->blo', h, params['Wv3']) + params['bv3'])
    set_values = jnp.einsum('bij,ijk->bik', attn, G)
    summarized = jnp.einsum('bij,bik->bjk', set_values, v)
    flat = summarized.reshape(B, -1)
    h = jax.nn.relu(flat @ params['Wh1'].T + params['bh1'])
    h = jax.nn.relu(h @ params['Wh2'].T + params['bh2'])
    return jax.nn.softmax(h @ params['Wh3'].T + params['bh3'], axis=-1)


if __name__ == "__main__":
    B, L = 2, 8
    max_sequence_length = 16
    sequence_dim, embed_dim, set_dim = 4, 32, 8
    vdim, num_classes = 1, 3            # vdim=1 is the module default

    key = jax.random.PRNGKey(0)
    kx, kp = jax.random.split(key)
    x = jax.random.normal(kx, (B, L, sequence_dim), jnp.float32)

    params, phi = init_params(kp, seq_dim=sequence_dim, embed_dim=embed_dim,
                              set_dim=set_dim, vdim=vdim,
                              num_classes=num_classes)
    t = jnp.linspace(0.0, 1.0, max_sequence_length)
    G = set_phi_embedding(phi, t, L)     # (L, L, set_dim), batch-independent glue
    slab, meta = pack_params(params, G, B)   # one-time fusion into a single slab

    out = simple_transformer_forward(x, slab, meta)
    out = jax.block_until_ready(out)

    ref = reference_forward(x, params, G)
    assert out.shape == (B, num_classes), out.shape
    np.testing.assert_allclose(np.asarray(out), np.asarray(ref),
                               rtol=1e-4, atol=1e-5)
    print("KERNEL_OK")
</pallas_src>

<mosaic_0001>
module attributes {stable_mosaic.version = 11 : i64} {
  func.func @kernel(%arg0: memref<16x4xf32, #tpu.memory_space<vmem>>, %arg1: memref<168x384xf32, #tpu.memory_space<vmem>>, %arg2: memref<8x128xf32, #tpu.memory_space<vmem>>) attributes {dimension_semantics = [], scalar_prefetch = 0 : i64, scratch_operands = 0 : i64, tpu.core_type = #tpu.core_type<tc>} {
    %c0 = arith.constant 0 : index
    %c0_0 = arith.constant 0 : index
    %0 = vector.load %arg0[%c0, %c0_0] : memref<16x4xf32, #tpu.memory_space<vmem>>, vector<16x4xf32>
    %c24 = arith.constant 24 : index
    %c0_1 = arith.constant 0 : index
    %1 = vector.load %arg1[%c24, %c0_1] : memref<168x384xf32, #tpu.memory_space<vmem>>, vector<8x128xf32>
    %2 = vector.extract_strided_slice %1 {offsets = [0, 0], sizes = [1, 4], strides = [1, 1]} : vector<8x128xf32> to vector<1x4xf32>
    %3 = vector.extract_strided_slice %1 {offsets = [1, 0], sizes = [1, 4], strides = [1, 1]} : vector<8x128xf32> to vector<1x4xf32>
    %4 = vector.extract_strided_slice %1 {offsets = [2, 0], sizes = [1, 1], strides = [1, 1]} : vector<8x128xf32> to vector<1x1xf32>
    %5 = vector.extract_strided_slice %1 {offsets = [3, 0], sizes = [1, 8], strides = [1, 1]} : vector<8x128xf32> to vector<1x8xf32>
    %6 = vector.extract_strided_slice %1 {offsets = [4, 0], sizes = [1, 8], strides = [1, 1]} : vector<8x128xf32> to vector<1x8xf32>
    %7 = vector.extract_strided_slice %1 {offsets = [5, 0], sizes = [1, 128], strides = [1, 1]} : vector<8x128xf32> to vector<1x128xf32>
    %8 = vector.extract_strided_slice %1 {offsets = [6, 0], sizes = [1, 1], strides = [1, 1]} : vector<8x128xf32> to vector<1x1xf32>
    %c0_2 = arith.constant 0 : index
    %c0_3 = arith.constant 0 : index
    %9 = vector.load %arg1[%c0_2, %c0_3] : memref<168x384xf32, #tpu.memory_space<vmem>>, vector<4x384xf32>
    %cst = arith.constant dense<0.000000e+00> : vector<16x384xf32>
    %10 = tpu.matmul %0, %9, %cst {dimension_numbers = #tpu.dot_dimension_numbers<[1], [0], [0], [1], [0, 0, 1, 1], [], []>} : vector<16x4xf32>, vector<4x384xf32>, vector<16x384xf32> -> vector<16x384xf32>
    %11 = vector.extract_strided_slice %10 {offsets = [0, 0], sizes = [16, 32], strides = [1, 1]} : vector<16x384xf32> to vector<16x32xf32>
    %12 = vector.extract_strided_slice %10 {offsets = [0, 128], sizes = [16, 32], strides = [1, 1]} : vector<16x384xf32> to vector<16x32xf32>
    %13 = vector.extract_strided_slice %10 {offsets = [0, 256], sizes = [16, 4], strides = [1, 1]} : vector<16x384xf32> to vector<16x4xf32>
    %14 = vector.broadcast %2 : vector<1x4xf32> to vector<16x4xf32>
    %15 = arith.addf %13, %14 : vector<16x4xf32>
    %cst_4 = arith.constant 0.000000e+00 : f32
    %16 = vector.broadcast %cst_4 : f32 to vector<16x4xf32>
    %17 = arith.maximumf %15, %16 : vector<16x4xf32>
    %c8 = arith.constant 8 : index
    %c0_5 = arith.constant 0 : index
    %18 = vector.load %arg1[%c8, %c0_5] : memref<168x384xf32, #tpu.memory_space<vmem>>, vector<4x4xf32>
    %cst_6 = arith.constant dense<0.000000e+00> : vector<16x4xf32>
    %19 = tpu.matmul %17, %18, %cst_6 {dimension_numbers = #tpu.dot_dimension_numbers<[1], [0], [0], [1], [0, 0, 1, 1], [], []>} : vector<16x4xf32>, vector<4x4xf32>, vector<16x4xf32> -> vector<16x4xf32>
    %20 = vector.broadcast %3 : vector<1x4xf32> to vector<16x4xf32>
    %21 = arith.addf %19, %20 : vector<16x4xf32>
    %cst_7 = arith.constant 0.000000e+00 : f32
    %22 = vector.broadcast %cst_7 : f32 to vector<16x4xf32>
    %23 = arith.maximumf %21, %22 : vector<16x4xf32>
    %c16 = arith.constant 16 : index
    %c0_8 = arith.constant 0 : index
    %24 = vector.load %arg1[%c16, %c0_8] : memref<168x384xf32, #tpu.memory_space<vmem>>, vector<4x1xf32>
    %cst_9 = arith.constant dense<0.000000e+00> : vector<16x1xf32>
    %25 = tpu.matmul %23, %24, %cst_9 {dimension_numbers = #tpu.dot_dimension_numbers<[1], [0], [0], [1], [0, 0, 1, 1], [], []>} : vector<16x4xf32>, vector<4x1xf32>, vector<16x1xf32> -> vector<16x1xf32>
    %26 = vector.broadcast %4 : vector<1x1xf32> to vector<16x1xf32>
    %27 = arith.addf %25, %26 : vector<16x1xf32>
    %28 = arith.negf %27 : vector<16x1xf32>
    %29 = math.exp %28 : vector<16x1xf32>
    %cst_10 = arith.constant 1.000000e+00 : f32
    %30 = vector.broadcast %cst_10 : f32 to vector<16x1xf32>
    %31 = arith.addf %30, %29 : vector<16x1xf32>
    %32 = arith.divf %30, %31 : vector<16x1xf32>
    %cst_11 = arith.constant dense<0.000000e+00> : vector<16x16xf32>
    %33 = tpu.matmul %11, %12, %cst_11 {dimension_numbers = #tpu.dot_dimension_numbers<[1], [1], [0], [0], [0, 0, 1, 0], [], []>} : vector<16x32xf32>, vector<16x32xf32>, vector<16x16xf32> -> vector<16x16xf32>
    %c32 = arith.constant 32 : index
    %c0_12 = arith.constant 0 : index
    %34 = vector.load %arg1[%c32, %c0_12] : memref<168x384xf32, #tpu.memory_space<vmem>>, vector<16x16xf32>
    %35 = vector.broadcast %8 : vector<1x1xf32> to vector<16x16xf32>
    %36 = arith.addf %33, %35 : vector<16x16xf32>
    %37 = arith.negf %36 : vector<16x16xf32>
    %38 = math.exp %37 : vector<16x16xf32>
    %cst_13 = arith.constant 1.000000e+00 : f32
    %39 = vector.broadcast %cst_13 : f32 to vector<16x16xf32>
    %40 = arith.addf %39, %38 : vector<16x16xf32>
    %41 = arith.divf %39, %40 : vector<16x16xf32>
    %42 = arith.mulf %41, %34 : vector<16x16xf32>
    %43 = vector.broadcast %32 : vector<16x1xf32> to vector<16x16xf32>
    %44 = arith.mulf %42, %43 : vector<16x16xf32>
    %c48 = arith.constant 48 : index
    %c0_14 = arith.constant 0 : index
    %45 = vector.load %arg1[%c48, %c0_14] : memref<168x384xf32, #tpu.memory_space<vmem>>, vector<16x64xf32>
    %c64 = arith.constant 64 : index
    %c0_15 = arith.constant 0 : index
    %46 = vector.load %arg1[%c64, %c0_15] : memref<168x384xf32, #tpu.memory_space<vmem>>, vector<16x64xf32>
    %cst_16 = arith.constant dense<0.000000e+00> : vector<16x64xf32>
    %47 = tpu.matmul %44, %45, %cst_16 {dimension_numbers = #tpu.dot_dimension_numbers<[1], [0], [0], [1], [0, 0, 1, 1], [], []>} : vector<16x16xf32>, vector<16x64xf32>, vector<16x64xf32> -> vector<16x64xf32>
    %48 = arith.mulf %47, %46 : vector<16x64xf32>
    %c80 = arith.constant 80 : index
    %c0_17 = arith.constant 0 : index
    %49 = vector.load %arg1[%c80, %c0_17] : memref<168x384xf32, #tpu.memory_space<vmem>>, vector<8x16xf32>
    %cst_18 = arith.constant dense<0.000000e+00> : vector<8x64xf32>
    %50 = tpu.matmul %49, %48, %cst_18 {dimension_numbers = #tpu.dot_dimension_numbers<[1], [0], [0], [1], [0, 0, 1, 1], [], []>} : vector<8x16xf32>, vector<16x64xf32>, vector<8x64xf32> -> vector<8x64xf32>
    %c88 = arith.constant 88 : index
    %c0_19 = arith.constant 0 : index
    %51 = vector.load %arg1[%c88, %c0_19] : memref<168x384xf32, #tpu.memory_space<vmem>>, vector<64x8xf32>
    %cst_20 = arith.constant dense<0.000000e+00> : vector<8x8xf32>
    %52 = tpu.matmul %50, %51, %cst_20 {dimension_numbers = #tpu.dot_dimension_numbers<[1], [0], [0], [1], [0, 0, 1, 1], [], []>} : vector<8x64xf32>, vector<64x8xf32>, vector<8x8xf32> -> vector<8x8xf32>
    %53 = vector.broadcast %5 : vector<1x8xf32> to vector<8x8xf32>
    %54 = arith.addf %52, %53 : vector<8x8xf32>
    %cst_21 = arith.constant 0.000000e+00 : f32
    %55 = vector.broadcast %cst_21 : f32 to vector<8x8xf32>
    %56 = arith.maximumf %54, %55 : vector<8x8xf32>
    %c152 = arith.constant 152 : index
    %c0_22 = arith.constant 0 : index
    %57 = vector.load %arg1[%c152, %c0_22] : memref<168x384xf32, #tpu.memory_space<vmem>>, vector<8x8xf32>
    %cst_23 = arith.constant dense<0.000000e+00> : vector<8x8xf32>
    %58 = tpu.matmul %56, %57, %cst_23 {dimension_numbers = #tpu.dot_dimension_numbers<[1], [0], [0], [1], [0, 0, 1, 1], [], []>} : vector<8x8xf32>, vector<8x8xf32>, vector<8x8xf32> -> vector<8x8xf32>
    %59 = vector.broadcast %6 : vector<1x8xf32> to vector<8x8xf32>
    %60 = arith.addf %58, %59 : vector<8x8xf32>
    %cst_24 = arith.constant 0.000000e+00 : f32
    %61 = vector.broadcast %cst_24 : f32 to vector<8x8xf32>
    %62 = arith.maximumf %60, %61 : vector<8x8xf32>
    %c160 = arith.constant 160 : index
    %c0_25 = arith.constant 0 : index
    %63 = vector.load %arg1[%c160, %c0_25] : memref<168x384xf32, #tpu.memory_space<vmem>>, vector<8x128xf32>
    %cst_26 = arith.constant dense<0.000000e+00> : vector<8x128xf32>
    %64 = tpu.matmul %62, %63, %cst_26 {dimension_numbers = #tpu.dot_dimension_numbers<[1], [0], [0], [1], [0, 0, 1, 1], [], []>} : vector<8x8xf32>, vector<8x128xf32>, vector<8x128xf32> -> vector<8x128xf32>
    %65 = vector.broadcast %7 : vector<1x128xf32> to vector<8x128xf32>
    %66 = arith.addf %64, %65 : vector<8x128xf32>
    %cst_27 = arith.constant dense<0xFF800000> : vector<8xf32>
    %67 = vector.multi_reduction <maximumf>, %66, %cst_27 [1] : vector<8x128xf32> to vector<8xf32>
    %cst_28 = arith.constant 0xFF800000 : f32
    %68 = vector.broadcast %cst_28 : f32 to vector<8xf32>
    %69 = arith.maximumf %68, %67 : vector<8xf32>
    %70 = vector.shape_cast %69 : vector<8xf32> to vector<8x1xf32>
    %71 = vector.broadcast %70 : vector<8x1xf32> to vector<8x128xf32>
    %72 = arith.subf %66, %71 : vector<8x128xf32>
    %73 = math.exp %72 : vector<8x128xf32>
    %cst_29 = arith.constant dense<0.000000e+00> : vector<8xf32>
    %74 = vector.multi_reduction <add>, %73, %cst_29 [1] : vector<8x128xf32> to vector<8xf32>
    %75 = vector.shape_cast %74 : vector<8xf32> to vector<8x1xf32>
    %76 = vector.broadcast %75 : vector<8x1xf32> to vector<8x128xf32>
    %77 = arith.divf %73, %76 : vector<8x128xf32>
    %c0_30 = arith.constant 0 : index
    %c0_31 = arith.constant 0 : index
    %78 = vector.load %arg2[%c0_30, %c0_31] : memref<8x128xf32, #tpu.memory_space<vmem>>, vector<8x128xf32>
    tpu.vector_store %arg2[%c0_30, %c0_31], %77 {strides = array<i32>} : memref<8x128xf32, #tpu.memory_space<vmem>>, vector<8x128xf32>,
    return
  }
}

</mosaic_0001>

<llo_original>
// kernel: tpu_custom_call.1
$region0: #{tpu_custom_call.1}
  #allocation0 [shape = 'u32[]', space=smem, size = 0x4, offset = 0x4, fixed_abs, tag = 'smem constant byte address 0x4 - core index']
  #allocation1 [shape = 'u32[144,128]{1,0:T(1,128)}', space=vmem, size = 0x12000, scoped, tag = 'internal scratch']
  %s0 = inlined_call_operand.vmem [shape: f32[16,4], index: 0, kind: input, shape index: {}]
  %s1 = inlined_call_operand.hbm [shape: f32[168,384], index: 1, kind: input, shape index: {}]
  %s2 = inlined_call_operand.hbm [shape: f32[8,128], index: 2, kind: output, shape index: {}]
  %s3 = sld [smem:[#allocation0]]
  $region22: #{tpu_custom_call.1} parent=0
    _
  %s5 = ssub.s32 1, %s3
  %s6 = scalar_select 0, %s5, %s3
  $region1: #{tpu_custom_call.1} parent=0
    #allocation2 [shape = 'u8[258048]{0}', space=vmem, size = 0x3f000, scoped, tag = 'input window, operand 1, single buffered']
    #allocation3 [shape = 's32[1]{0}', space=sflag, size = 0x4, scoped, tag = 'scoped memory for tpu_custom_call.1']
    #allocation4 [shape = 's32[1]{0}', space=sflag, size = 0x4, scoped, tag = 'scoped memory for tpu_custom_call.1']
    #allocation5 [shape = 'u8[4096]{0}', space=vmem, size = 0x1000, scoped, tag = 'output window, operand 0, single buffered']
    %7 = vsyncpa [#allocation3], 0
    %8 = vsyncpa [#allocation4], 0
    // Predicated region
    $region2: #{tpu_custom_call.1} parent=1 // pred_check
      _
    $region3: #{tpu_custom_call.1} parent=1 // pred_check_branch
      %10 = sbr.rel (0) target = $region5
    $region4: #{tpu_custom_call.1} parent=1 // pred_region
      _
    $region5: #{tpu_custom_call.1} parent=1 // pred_fallthru
      _
    // Predicated region
    $region6: #{tpu_custom_call.1} parent=1 // pred_check
      _
    $region7: #{tpu_custom_call.1} parent=1 // pred_check_branch
      %12 = sbr.rel (0) target = $region9
    $region8: #{tpu_custom_call.1} parent=1 // pred_region
      %s14 = ssub.s32 8064, 8064
      %15 = vsyncadd [#allocation3], %s14
      %s16 = sshll.u32 [#allocation2], 4
      %s17 = int_to_ptr.vmem [resolvable:$true] %s16
      %22 = dma.hbm_to_vmem [thread:$0]  %s1, 8064, %s17, [#allocation3], 384, 384, 24
    $region9: #{tpu_custom_call.1} parent=1 // pred_fallthru
      _
    // Predicated region
    $region10: #{tpu_custom_call.1} parent=1 // pred_check
      _
    $region11: #{tpu_custom_call.1} parent=1 // pred_check_branch
      %24 = sbr.rel (0) target = $region13
    $region12: #{tpu_custom_call.1} parent=1 // pred_region
      %25 = dma.done [#allocation3], 8064
    $region13: #{tpu_custom_call.1} parent=1 // pred_fallthru
      _
    %v26 = vld [vmem:[%s0] sm:$0xff]
    %v27 = vld [vmem:[%s0 + $0x8] sm:$0xff]
    %v28 = vld [vmem:[#allocation2 + $0x48] sm:$0xff]
    %v29 = vld [vmem:[#allocation2] sm:$0xf]
    %v30 = vld [vmem:[#allocation2 + $0x8] sm:$0xf]
    %v31 = vld [vmem:[#allocation2 + $0x10] sm:$0xf]
    %vm32 = vcmask 31744
    %v34 = vsel %vm32, %v26, 0
    %v37 = vsel %vm32, %v27, 0
    %vm39 = vcmask 1043456
    %v41 = vsel %vm39, %v29, 0
    %v44 = vsel %vm39, %v30, 0
    %v47 = vsel %vm39, %v31, 0
    %49 = vmatprep.subr.mxu0 %v44
    %50 = vmatpush1.msra.mxu0 %v41
    %51 = vmatprep.subr.mxu0 0.0
    %52 = vmatpush1.msra.mxu0 0.0
    %53 = vmatprep.subr.mxu0 0.0
    %54 = vmatpush1.msra.mxu0 0.0
    %55 = vmatprep.subr.mxu0 0.0
    %56 = vmatpush1.msra.mxu0 0.0
    %57 = vmatprep.subr.mxu0 0.0
    %58 = vmatpush1.msra.mxu0 0.0
    %59 = vmatprep.subr.mxu0 0.0
    %60 = vmatpush1.msra.mxu0 0.0
    %61 = vmatprep.subr.mxu0 0.0
    %62 = vmatpush1.msra.mxu0 0.0
    %63 = vmatprep.subr.mxu0 0.0
    %64 = vmatpush1.msra.mxu0 0.0
    %65 = vmatprep.subr.mxu0 0.0
    %66 = vmatpush1.msra.mxu0 0.0
    %67 = vmatprep.subr.mxu0 0.0
    %68 = vmatpush1.msra.mxu0 0.0
    %69 = vmatprep.subr.mxu0 0.0
    %70 = vmatpush1.msra.mxu0 0.0
    %71 = vmatprep.subr.mxu0 0.0
    %72 = vmatpush1.msra.mxu0 0.0
    %73 = vmatprep.subr.mxu0 0.0
    %74 = vmatpush1.msra.mxu0 0.0
    %75 = vmatprep.subr.mxu0 0.0
    %76 = vmatpush1.msra.mxu0 0.0
    %77 = vmatprep.subr.mxu0 0.0
    %78 = vmatpush1.msra.mxu0 0.0
    %79 = vmatprep.subr.mxu0 0.0
    %80 = vmatpush1.msra.mxu0 0.0
    %81 = vmatprep.subr.mxu0 0.0
    %82 = vmatpush1.msra.mxu0 0.0
    %83 = vmatprep.subr.mxu0 0.0
    %84 = vmatpush1.msra.mxu0 0.0
    %85 = vmatprep.subr.mxu0 0.0
    %86 = vmatpush1.msra.mxu0 0.0
    %87 = vmatprep.subr.mxu0 0.0
    %88 = vmatpush1.msra.mxu0 0.0
    %89 = vmatprep.subr.mxu0 0.0
    %90 = vmatpush1.msra.mxu0 0.0
    %91 = vmatprep.subr.mxu0 0.0
    %92 = vmatpush1.msra.mxu0 0.0
    %93 = vmatprep.subr.mxu0 0.0
    %94 = vmatpush1.msra.mxu0 0.0
    %95 = vmatprep.subr.mxu0 0.0
    %96 = vmatpush1.msra.mxu0 0.0
    %97 = vmatprep.subr.mxu0 0.0
    %98 = vmatpush1.msra.mxu0 0.0
    %99 = vmatprep.subr.mxu0 0.0
    %100 = vmatpush1.msra.mxu0 0.0
    %101 = vmatprep.subr.mxu0 0.0
    %102 = vmatpush1.msra.mxu0 0.0
    %103 = vmatprep.subr.mxu0 0.0
    %104 = vmatpush1.msra.mxu0 0.0
    %105 = vmatprep.subr.mxu0 0.0
    %106 = vmatpush1.msra.mxu0 0.0
    %107 = vmatprep.subr.mxu0 0.0
    %108 = vmatpush1.msra.mxu0 0.0
    %109 = vmatprep.subr.mxu0 0.0
    %110 = vmatpush1.msra.mxu0 0.0
    %111 = vmatprep.subr.mxu0 0.0
    %112 = vmatpush1.msra.mxu0 0.0
    %113 = vmatprep.mubr.f32.mxu0 0.0
    %114 = vmatmul.mubr.f32.gmra.mrb[0].mxu0 %v34
    %v115 = vpop.f32.mrb[0].mxu0
    %v116 = vadd.f32 0.0, %v115
    %v117 = vpop.f32.mrb[0].mxu0
    %v118 = vadd.f32 0.0, %v117
    %119 = vmatprep.mubr.f32.mxu0 0.0
    %120 = vmatmul.mubr.f32.gmra.mrb[0].mxu0 %v37
    %v121 = vpop.f32.mrb[0].mxu0
    %v122 = vadd.f32 0.0, %v121
    %v123 = vpop.f32.mrb[0].mxu0
    %v124 = vadd.f32 0.0, %v123
    %125 = vdwg.mxu0
    %126 = vmatprep.subr.mxu0 0.0
    %127 = vmatpush1.msra.mxu0 %v47
    %128 = vmatprep.subr.mxu0 0.0
    %129 = vmatpush1.msra.mxu0 0.0
    %130 = vmatprep.subr.mxu0 0.0
    %131 = vmatpush1.msra.mxu0 0.0
    %132 = vmatprep.subr.mxu0 0.0
    %133 = vmatpush1.msra.mxu0 0.0
    %134 = vmatprep.subr.mxu0 0.0
    %135 = vmatpush1.msra.mxu0 0.0
    %136 = vmatprep.subr.mxu0 0.0
    %137 = vmatpush1.msra.mxu0 0.0
    %138 = vmatprep.subr.mxu0 0.0
    %139 = vmatpush1.msra.mxu0 0.0
    %140 = vmatprep.subr.mxu0 0.0
    %141 = vmatpush1.msra.mxu0 0.0
    %142 = vmatprep.subr.mxu0 0.0
    %143 = vmatpush1.msra.mxu0 0.0
    %144 = vmatprep.subr.mxu0 0.0
    %145 = vmatpush1.msra.mxu0 0.0
    %146 = vmatprep.subr.mxu0 0.0
    %147 = vmatpush1.msra.mxu0 0.0
    %148 = vmatprep.subr.mxu0 0.0
    %149 = vmatpush1.msra.mxu0 0.0
    %150 = vmatprep.subr.mxu0 0.0
    %151 = vmatpush1.msra.mxu0 0.0
    %152 = vmatprep.subr.mxu0 0.0
    %153 = vmatpush1.msra.mxu0 0.0
    %154 = vmatprep.subr.mxu0 0.0
    %155 = vmatpush1.msra.mxu0 0.0
    %156 = vmatprep.subr.mxu0 0.0
    %157 = vmatpush1.msra.mxu0 0.0
    %158 = vmatprep.subr.mxu0 0.0
    %159 = vmatpush1.msra.mxu0 0.0
    %160 = vmatprep.subr.mxu0 0.0
    %161 = vmatpush1.msra.mxu0 0.0
    %162 = vmatprep.subr.mxu0 0.0
    %163 = vmatpush1.msra.mxu0 0.0
    %164 = vmatprep.subr.mxu0 0.0
    %165 = vmatpush1.msra.mxu0 0.0
    %166 = vmatprep.subr.mxu0 0.0
    %167 = vmatpush1.msra.mxu0 0.0
    %168 = vmatprep.subr.mxu0 0.0
    %169 = vmatpush1.msra.mxu0 0.0
    %170 = vmatprep.subr.mxu0 0.0
    %171 = vmatpush1.msra.mxu0 0.0
    %172 = vmatprep.subr.mxu0 0.0
    %173 = vmatpush1.msra.mxu0 0.0
    %174 = vmatprep.subr.mxu0 0.0
    %175 = vmatpush1.msra.mxu0 0.0
    %176 = vmatprep.subr.mxu0 0.0
    %177 = vmatpush1.msra.mxu0 0.0
    %178 = vmatprep.subr.mxu0 0.0
    %179 = vmatpush1.msra.mxu0 0.0
    %180 = vmatprep.subr.mxu0 0.0
    %181 = vmatpush1.msra.mxu0 0.0
    %182 = vmatprep.subr.mxu0 0.0
    %183 = vmatpush1.msra.mxu0 0.0
    %184 = vmatprep.subr.mxu0 0.0
    %185 = vmatpush1.msra.mxu0 0.0
    %186 = vmatprep.subr.mxu0 0.0
    %187 = vmatpush1.msra.mxu0 0.0
    %188 = vmatprep.subr.mxu0 0.0
    %189 = vmatpush1.msra.mxu0 0.0
    %190 = vmatprep.mubr.f32.mxu0 0.0
    %191 = vmatmul.mubr.f32.gmra.mrb[0].mxu0 %v34
    %v192 = vpop.f32.mrb[0].mxu0
    %v193 = vadd.f32 0.0, %v192
    %v194 = vpop.f32.mrb[0].mxu0
    %195 = vmatprep.mubr.f32.mxu0 0.0
    %196 = vmatmul.mubr.f32.gmra.mrb[0].mxu0 %v37
    %v197 = vpop.f32.mrb[0].mxu0
    %v198 = vadd.f32 0.0, %v197
    %v199 = vpop.f32.mrb[0].mxu0
    %200 = vdwg.mxu0
    %v201 = vlaneseq
    %v202 = vshrl.u32 %v201, 7
    %v203 = vsub.s32 0, %v202
    %v204 = vrot.slane %v28, %v203
    %v205 = vadd.f32 %v193, %v204
    %v206 = vadd.f32 %v198, %v204
    %v207 = vmax.f32 %v205, 0.0
    %v208 = vmax.f32 %v206, 0.0
    %v209 = vld [vmem:[#allocation2 + $0x18] sm:$0xf]
    %v210 = vlaneseq
    %v211 = vshrl.u32 %v210, 7
    %v212 = vsub.s32 1, %v211
    %v213 = vrot.slane %v28, %v212
    %v215 = vsel %vm32, %v207, 0
    %v218 = vsel %vm32, %v208, 0
    %v221 = vsel %vm39, %v209, 0
    %223 = vmatprep.subr.mxu0 0.0
    %224 = vmatpush1.msra.mxu0 %v221
    %225 = vmatprep.subr.mxu0 0.0
    %226 = vmatpush1.msra.mxu0 0.0
    %227 = vmatprep.subr.mxu0 0.0
    %228 = vmatpush1.msra.mxu0 0.0
    %229 = vmatprep.subr.mxu0 0.0
    %230 = vmatpush1.msra.mxu0 0.0
    %231 = vmatprep.subr.mxu0 0.0
    %232 = vmatpush1.msra.mxu0 0.0
    %233 = vmatprep.subr.mxu0 0.0
    %234 = vmatpush1.msra.mxu0 0.0
    %235 = vmatprep.subr.mxu0 0.0
    %236 = vmatpush1.msra.mxu0 0.0
    %237 = vmatprep.subr.mxu0 0.0
    %238 = vmatpush1.msra.mxu0 0.0
    %239 = vmatprep.subr.mxu0 0.0
    %240 = vmatpush1.msra.mxu0 0.0
    %241 = vmatprep.subr.mxu0 0.0
    %242 = vmatpush1.msra.mxu0 0.0
    %243 = vmatprep.subr.mxu0 0.0
    %244 = vmatpush1.msra.mxu0 0.0
    %245 = vmatprep.subr.mxu0 0.0
    %246 = vmatpush1.msra.mxu0 0.0
    %247 = vmatprep.subr.mxu0 0.0
    %248 = vmatpush1.msra.mxu0 0.0
    %249 = vmatprep.subr.mxu0 0.0
    %250 = vmatpush1.msra.mxu0 0.0
    %251 = vmatprep.subr.mxu0 0.0
    %252 = vmatpush1.msra.mxu0 0.0
    %253 = vmatprep.subr.mxu0 0.0
    %254 = vmatpush1.msra.mxu0 0.0
    %255 = vmatprep.subr.mxu0 0.0
    %256 = vmatpush1.msra.mxu0 0.0
    %257 = vmatprep.subr.mxu0 0.0
    %258 = vmatpush1.msra.mxu0 0.0
    %259 = vmatprep.subr.mxu0 0.0
    %260 = vmatpush1.msra.mxu0 0.0
    %261 = vmatprep.subr.mxu0 0.0
    %262 = vmatpush1.msra.mxu0 0.0
    %263 = vmatprep.subr.mxu0 0.0
    %264 = vmatpush1.msra.mxu0 0.0
    %265 = vmatprep.subr.mxu0 0.0
    %266 = vmatpush1.msra.mxu0 0.0
    %267 = vmatprep.subr.mxu0 0.0
    %268 = vmatpush1.msra.mxu0 0.0
    %269 = vmatprep.subr.mxu0 0.0
    %270 = vmatpush1.msra.mxu0 0.0
    %271 = vmatprep.subr.mxu0 0.0
    %272 = vmatpush1.msra.mxu0 0.0
    %273 = vmatprep.subr.mxu0 0.0
    %274 = vmatpush1.msra.mxu0 0.0
    %275 = vmatprep.subr.mxu0 0.0
    %276 = vmatpush1.msra.mxu0 0.0
    %277 = vmatprep.subr.mxu0 0.0
    %278 = vmatpush1.msra.mxu0 0.0
    %279 = vmatprep.subr.mxu0 0.0
    %280 = vmatpush1.msra.mxu0 0.0
    %281 = vmatprep.subr.mxu0 0.0
    %282 = vmatpush1.msra.mxu0 0.0
    %283 = vmatprep.subr.mxu0 0.0
    %284 = vmatpush1.msra.mxu0 0.0
    %285 = vmatprep.subr.mxu0 0.0
    %286 = vmatpush1.msra.mxu0 0.0
    %287 = vmatprep.mubr.f32.mxu0 0.0
    %288 = vmatmul.mubr.f32.gmra.mrb[0].mxu0 %v215
    %v289 = vpop.f32.mrb[0].mxu0
    %v290 = vadd.f32 %v213, %v289
    %v291 = vpop.f32.mrb[0].mxu0
    %292 = vmatprep.mubr.f32.mxu0 0.0
    %293 = vmatmul.mubr.f32.gmra.mrb[0].mxu0 %v218
    %v294 = vpop.f32.mrb[0].mxu0
    %v295 = vadd.f32 %v213, %v294
    %v296 = vpop.f32.mrb[0].mxu0
    %297 = vdwg.mxu0
    %v298 = vmax.f32 %v290, 0.0
    %v299 = vmax.f32 %v295, 0.0
    %v300 = vld [vmem:[#allocation2 + $0x30] sm:$0xf]
    %v301 = vlaneseq
    %v302 = vshrl.u32 %v301, 7
    %v303 = vsub.s32 2, %v302
    %v304 = vrot.slane %v28, %v303
    %v306 = vsel %vm32, %v298, 0
    %v309 = vsel %vm32, %v299, 0
    %v312 = vsel %vm39, %v300, 0
    %314 = vmatprep.subr.mxu0 0.0
    %315 = vmatpush1.msra.mxu0 %v312
    %316 = vmatprep.subr.mxu0 0.0
    %317 = vmatpush1.msra.mxu0 0.0
    %318 = vmatprep.subr.mxu0 0.0
    %319 = vmatpush1.msra.mxu0 0.0
    %320 = vmatprep.subr.mxu0 0.0
    %321 = vmatpush1.msra.mxu0 0.0
    %322 = vmatprep.subr.mxu0 0.0
    %323 = vmatpush1.msra.mxu0 0.0
    %324 = vmatprep.subr.mxu0 0.0
    %325 = vmatpush1.msra.mxu0 0.0
    %326 = vmatprep.subr.mxu0 0.0
    %327 = vmatpush1.msra.mxu0 0.0
    %328 = vmatprep.subr.mxu0 0.0
    %329 = vmatpush1.msra.mxu0 0.0
    %330 = vmatprep.subr.mxu0 0.0
    %331 = vmatpush1.msra.mxu0 0.0
    %332 = vmatprep.subr.mxu0 0.0
    %333 = vmatpush1.msra.mxu0 0.0
    %334 = vmatprep.subr.mxu0 0.0
    %335 = vmatpush1.msra.mxu0 0.0
    %336 = vmatprep.subr.mxu0 0.0
    %337 = vmatpush1.msra.mxu0 0.0
    %338 = vmatprep.subr.mxu0 0.0
    %339 = vmatpush1.msra.mxu0 0.0
    %340 = vmatprep.subr.mxu0 0.0
    %341 = vmatpush1.msra.mxu0 0.0
    %342 = vmatprep.subr.mxu0 0.0
    %343 = vmatpush1.msra.mxu0 0.0
    %344 = vmatprep.subr.mxu0 0.0
    %345 = vmatpush1.msra.mxu0 0.0
    %346 = vmatprep.subr.mxu0 0.0
    %347 = vmatpush1.msra.mxu0 0.0
    %348 = vmatprep.subr.mxu0 0.0
    %349 = vmatpush1.msra.mxu0 0.0
    %350 = vmatprep.subr.mxu0 0.0
    %351 = vmatpush1.msra.mxu0 0.0
    %352 = vmatprep.subr.mxu0 0.0
    %353 = vmatpush1.msra.mxu0 0.0
    %354 = vmatprep.subr.mxu0 0.0
    %355 = vmatpush1.msra.mxu0 0.0
    %356 = vmatprep.subr.mxu0 0.0
    %357 = vmatpush1.msra.mxu0 0.0
    %358 = vmatprep.subr.mxu0 0.0
    %359 = vmatpush1.msra.mxu0 0.0
    %360 = vmatprep.subr.mxu0 0.0
    %361 = vmatpush1.msra.mxu0 0.0
    %362 = vmatprep.subr.mxu0 0.0
    %363 = vmatpush1.msra.mxu0 0.0
    %364 = vmatprep.subr.mxu0 0.0
    %365 = vmatpush1.msra.mxu0 0.0
    %366 = vmatprep.subr.mxu0 0.0
    %367 = vmatpush1.msra.mxu0 0.0
    %368 = vmatprep.subr.mxu0 0.0
    %369 = vmatpush1.msra.mxu0 0.0
    %370 = vmatprep.subr.mxu0 0.0
    %371 = vmatpush1.msra.mxu0 0.0
    %372 = vmatprep.subr.mxu0 0.0
    %373 = vmatpush1.msra.mxu0 0.0
    %374 = vmatprep.subr.mxu0 0.0
    %375 = vmatpush1.msra.mxu0 0.0
    %376 = vmatprep.subr.mxu0 0.0
    %377 = vmatpush1.msra.mxu0 0.0
    %378 = vmatprep.mubr.f32.mxu0 0.0
    %379 = vmatmul.mubr.f32.gmra.mrb[0].mxu0 %v306
    %v380 = vpop.f32.mrb[0].mxu0
    %v381 = vadd.f32 %v304, %v380
    %v382 = vpop.f32.mrb[0].mxu0
    %383 = vmatprep.mubr.f32.mxu0 0.0
    %384 = vmatmul.mubr.f32.gmra.mrb[0].mxu0 %v309
    %v385 = vpop.f32.mrb[0].mxu0
    %v386 = vadd.f32 %v304, %v385
    %v387 = vpop.f32.mrb[0].mxu0
    %388 = vdwg.mxu0
    %v389 = vxor.u32 %v381, 2147483648
    %v390 = vxor.u32 %v386, 2147483648
    %v391 = vmul.f32 %v389, 1.442695
    %v392 = vpow.pop %v391
    %v393 = vmul.f32 %v390, 1.442695
    %v394 = vpow.pop %v393
    %v395 = vadd.f32 %v392, 1.0
    %v396 = vadd.f32 %v394, 1.0
    %v397 = vrcp.pop %v395
    %v398 = vmul.f32 1.0, %v397
    %v399 = vrcp.pop %v396
    %v400 = vmul.f32 1.0, %v399
    %v401 = vld [vmem:[#allocation2 + $0x60] sm:$0xff]
    %v402 = vld [vmem:[#allocation2 + $0x78] sm:$0xff]
    %v404 = vrot.slane %v28, 6
    %s405 = vtos %v404
    %v406 = vstv %s405
    %vm408 = vcmask 261120
    %v410 = vsel %vm408, %v116, 0
    %v413 = vsel %vm408, %v122, 0
    %v416 = vsel %vm408, %v118, 0
    %v419 = vsel %vm408, %v124, 0
    %421 = vmatprep.subr.mxu0 0.0
    %422 = vmatpush1.xpose.msra.mxu0 %v416
    %423 = vmatprep.subr.mxu0 0.0
    %424 = vmatpush1.xpose.msra.mxu0 %v419
    %425 = vmatprep.subr.mxu0 0.0
    %426 = vmatpush1.xpose.msra.mxu0 0.0
    %427 = vmatprep.subr.mxu0 0.0
    %428 = vmatpush1.xpose.msra.mxu0 0.0
    %429 = vmatprep.subr.mxu0 0.0
    %430 = vmatpush1.xpose.msra.mxu0 0.0
    %431 = vmatprep.subr.mxu0 0.0
    %432 = vmatpush1.xpose.msra.mxu0 0.0
    %433 = vmatprep.subr.mxu0 0.0
    %434 = vmatpush1.xpose.msra.mxu0 0.0
    %435 = vmatprep.subr.mxu0 0.0
    %436 = vmatpush1.xpose.msra.mxu0 0.0
    %437 = vmatprep.subr.mxu0 0.0
    %438 = vmatpush1.xpose.msra.mxu0 0.0
    %439 = vmatprep.subr.mxu0 0.0
    %440 = vmatpush1.xpose.msra.mxu0 0.0
    %441 = vmatprep.subr.mxu0 0.0
    %442 = vmatpush1.xpose.msra.mxu0 0.0
    %443 = vmatprep.subr.mxu0 0.0
    %444 = vmatpush1.xpose.msra.mxu0 0.0
    %445 = vmatprep.subr.mxu0 0.0
    %446 = vmatpush1.xpose.msra.mxu0 0.0
    %447 = vmatprep.subr.mxu0 0.0
    %448 = vmatpush1.xpose.msra.mxu0 0.0
    %449 = vmatprep.subr.mxu0 0.0
    %450 = vmatpush1.xpose.msra.mxu0 0.0
    %451 = vmatprep.subr.mxu0 0.0
    %452 = vmatpush1.xpose.msra.mxu0 0.0
    %453 = vmatprep.subr.mxu0 0.0
    %454 = vmatpush1.xpose.msra.mxu0 0.0
    %455 = vmatprep.subr.mxu0 0.0
    %456 = vmatpush1.xpose.msra.mxu0 0.0
    %457 = vmatprep.subr.mxu0 0.0
    %458 = vmatpush1.xpose.msra.mxu0 0.0
    %459 = vmatprep.subr.mxu0 0.0
    %460 = vmatpush1.xpose.msra.mxu0 0.0
    %461 = vmatprep.subr.mxu0 0.0
    %462 = vmatpush1.xpose.msra.mxu0 0.0
    %463 = vmatprep.subr.mxu0 0.0
    %464 = vmatpush1.xpose.msra.mxu0 0.0
    %465 = vmatprep.subr.mxu0 0.0
    %466 = vmatpush1.xpose.msra.mxu0 0.0
    %467 = vmatprep.subr.mxu0 0.0
    %468 = vmatpush1.xpose.msra.mxu0 0.0
    %469 = vmatprep.subr.mxu0 0.0
    %470 = vmatpush1.xpose.msra.mxu0 0.0
    %471 = vmatprep.subr.mxu0 0.0
    %472 = vmatpush1.xpose.msra.mxu0 0.0
    %473 = vmatprep.subr.mxu0 0.0
    %474 = vmatpush1.xpose.msra.mxu0 0.0
    %475 = vmatprep.subr.mxu0 0.0
    %476 = vmatpush1.xpose.msra.mxu0 0.0
    %477 = vmatprep.subr.mxu0 0.0
    %478 = vmatpush1.xpose.msra.mxu0 0.0
    %479 = vmatprep.subr.mxu0 0.0
    %480 = vmatpush1.xpose.msra.mxu0 0.0
    %481 = vmatprep.subr.mxu0 0.0
    %482 = vmatpush1.xpose.msra.mxu0 0.0
    %483 = vmatprep.subr.mxu0 0.0
    %484 = vmatpush1.xpose.msra.mxu0 0.0
    %485 = vmatprep.mubr.f32.mxu0 0.0
    %486 = vmatmul.mubr.f32.gmra.mrb[0].mxu0 %v410
    %v487 = vpop.f32.mrb[0].mxu0
    %v488 = vadd.f32 %v406, %v487
    %v489 = vpop.f32.mrb[0].mxu0
    %490 = vmatprep.mubr.f32.mxu0 0.0
    %491 = vmatmul.mubr.f32.gmra.mrb[0].mxu0 %v413
    %v492 = vpop.f32.mrb[0].mxu0
    %v493 = vadd.f32 %v406, %v492
    %v494 = vpop.f32.mrb[0].mxu0
    %495 = vdwg.mxu0
    %v496 = vxor.u32 %v488, 2147483648
    %v497 = vxor.u32 %v493, 2147483648
    %v498 = vmul.f32 %v496, 1.442695
    %v499 = vpow.pop %v498
    %v500 = vmul.f32 %v497, 1.442695
    %v501 = vpow.pop %v500
    %v502 = vadd.f32 %v499, 1.0
    %v503 = vadd.f32 %v501, 1.0
    %v504 = vrcp.pop %v502
    %v505 = vmul.f32 1.0, %v504
    %v506 = vrcp.pop %v503
    %v507 = vmul.f32 1.0, %v506
    %v508 = vmul.f32 %v505, %v401
    %v509 = vmul.f32 %v507, %v402
    %511 = vset.pattern.permute.xlu0 0
    %512 = vperm.xlu0 %511, %v398
    %v513 = vpop.permute.xlu0 %512
    %516 = vset.pattern.permute.xlu0 0
    %517 = vperm.xlu0 %516, %v400
    %v518 = vpop.permute.xlu0 %517
    %v520 = vmul.f32 %v508, %v513
    %v521 = vmul.f32 %v509, %v518
    %v522 = vld [vmem:[#allocation2 + $0x90] sm:$0xff]
    %v523 = vld [vmem:[#allocation2 + $0xa8] sm:$0xff]
    %v524 = vld [vmem:[#allocation2 + $0xc0] sm:$0xff]
    %v525 = vld [vmem:[#allocation2 + $0xd8] sm:$0xff]
    %vm526 = vcmask 130048
    %v528 = vsel %vm526, %v520, 0
    %v531 = vsel %vm526, %v521, 0
    %533 = vmatprep.subr.mxu0 0.0
    %534 = vmatpush1.msra.mxu0 %v522
    %535 = vmatprep.subr.mxu0 0.0
    %536 = vmatpush1.msra.mxu0 %v523
    %537 = vmatprep.subr.mxu0 0.0
    %538 = vmatpush1.msra.mxu0 0.0
    %539 = vmatprep.subr.mxu0 0.0
    %540 = vmatpush1.msra.mxu0 0.0
    %541 = vmatprep.subr.mxu0 0.0
    %542 = vmatpush1.msra.mxu0 0.0
    %543 = vmatprep.subr.mxu0 0.0
    %544 = vmatpush1.msra.mxu0 0.0
    %545 = vmatprep.subr.mxu0 0.0
    %546 = vmatpush1.msra.mxu0 0.0
    %547 = vmatprep.subr.mxu0 0.0
    %548 = vmatpush1.msra.mxu0 0.0
    %549 = vmatprep.subr.mxu0 0.0
    %550 = vmatpush1.msra.mxu0 0.0
    %551 = vmatprep.subr.mxu0 0.0
    %552 = vmatpush1.msra.mxu0 0.0
    %553 = vmatprep.subr.mxu0 0.0
    %554 = vmatpush1.msra.mxu0 0.0
    %555 = vmatprep.subr.mxu0 0.0
    %556 = vmatpush1.msra.mxu0 0.0
    %557 = vmatprep.subr.mxu0 0.0
    %558 = vmatpush1.msra.mxu0 0.0
    %559 = vmatprep.subr.mxu0 0.0
    %560 = vmatpush1.msra.mxu0 0.0
    %561 = vmatprep.subr.mxu0 0.0
    %562 = vmatpush1.msra.mxu0 0.0
    %563 = vmatprep.subr.mxu0 0.0
    %564 = vmatpush1.msra.mxu0 0.0
    %565 = vmatprep.subr.mxu0 0.0
    %566 = vmatpush1.msra.mxu0 0.0
    %567 = vmatprep.subr.mxu0 0.0
    %568 = vmatpush1.msra.mxu0 0.0
    %569 = vmatprep.subr.mxu0 0.0
    %570 = vmatpush1.msra.mxu0 0.0
    %571 = vmatprep.subr.mxu0 0.0
    %572 = vmatpush1.msra.mxu0 0.0
    %573 = vmatprep.subr.mxu0 0.0
    %574 = vmatpush1.msra.mxu0 0.0
    %575 = vmatprep.subr.mxu0 0.0
    %576 = vmatpush1.msra.mxu0 0.0
    %577 = vmatprep.subr.mxu0 0.0
    %578 = vmatpush1.msra.mxu0 0.0
    %579 = vmatprep.subr.mxu0 0.0
    %580 = vmatpush1.msra.mxu0 0.0
    %581 = vmatprep.subr.mxu0 0.0
    %582 = vmatpush1.msra.mxu0 0.0
    %583 = vmatprep.subr.mxu0 0.0
    %584 = vmatpush1.msra.mxu0 0.0
    %585 = vmatprep.subr.mxu0 0.0
    %586 = vmatpush1.msra.mxu0 0.0
    %587 = vmatprep.subr.mxu0 0.0
    %588 = vmatpush1.msra.mxu0 0.0
    %589 = vmatprep.subr.mxu0 0.0
    %590 = vmatpush1.msra.mxu0 0.0
    %591 = vmatprep.subr.mxu0 0.0
    %592 = vmatpush1.msra.mxu0 0.0
    %593 = vmatprep.subr.mxu0 0.0
    %594 = vmatpush1.msra.mxu0 0.0
    %595 = vmatprep.subr.mxu0 0.0
    %596 = vmatpush1.msra.mxu0 0.0
    %597 = vmatprep.mubr.f32.mxu0 0.0
    %598 = vmatmul.mubr.f32.gmra.mrb[0].mxu0 %v528
    %v599 = vpop.f32.mrb[0].mxu0
    %v600 = vadd.f32 0.0, %v599
    %v601 = vpop.f32.mrb[0].mxu0
    %602 = vmatprep.mubr.f32.mxu0 0.0
    %603 = vmatmul.mubr.f32.gmra.mrb[0].mxu0 %v531
    %v604 = vpop.f32.mrb[0].mxu0
    %v605 = vadd.f32 0.0, %v604
    %v606 = vpop.f32.mrb[0].mxu0
    %607 = vdwg.mxu0
    %v608 = vmul.f32 %v600, %v524
    %v609 = vmul.f32 %v605, %v525
    %v610 = vld [vmem:[#allocation2 + $0xf0] sm:$0xff]
    %v612 = vsel %vm526, %v610, 0
    %614 = vmatprep.subr.mxu0 0.0
    %615 = vmatpush1.msra.mxu0 %v608
    %616 = vmatprep.subr.mxu0 0.0
    %617 = vmatpush1.msra.mxu0 %v609
    %618 = vmatprep.subr.mxu0 0.0
    %619 = vmatpush1.msra.mxu0 0.0
    %620 = vmatprep.subr.mxu0 0.0
    %621 = vmatpush1.msra.mxu0 0.0
    %622 = vmatprep.subr.mxu0 0.0
    %623 = vmatpush1.msra.mxu0 0.0
    %624 = vmatprep.subr.mxu0 0.0
    %625 = vmatpush1.msra.mxu0 0.0
    %626 = vmatprep.subr.mxu0 0.0
    %627 = vmatpush1.msra.mxu0 0.0
    %628 = vmatprep.subr.mxu0 0.0
    %629 = vmatpush1.msra.mxu0 0.0
    %630 = vmatprep.subr.mxu0 0.0
    %631 = vmatpush1.msra.mxu0 0.0
    %632 = vmatprep.subr.mxu0 0.0
    %633 = vmatpush1.msra.mxu0 0.0
    %634 = vmatprep.subr.mxu0 0.0
    %635 = vmatpush1.msra.mxu0 0.0
    %636 = vmatprep.subr.mxu0 0.0
    %637 = vmatpush1.msra.mxu0 0.0
    %638 = vmatprep.subr.mxu0 0.0
    %639 = vmatpush1.msra.mxu0 0.0
    %640 = vmatprep.subr.mxu0 0.0
    %641 = vmatpush1.msra.mxu0 0.0
    %642 = vmatprep.subr.mxu0 0.0
    %643 = vmatpush1.msra.mxu0 0.0
    %644 = vmatprep.subr.mxu0 0.0
    %645 = vmatpush1.msra.mxu0 0.0
    %646 = vmatprep.subr.mxu0 0.0
    %647 = vmatpush1.msra.mxu0 0.0
    %648 = vmatprep.subr.mxu0 0.0
    %649 = vmatpush1.msra.mxu0 0.0
    %650 = vmatprep.subr.mxu0 0.0
    %651 = vmatpush1.msra.mxu0 0.0
    %652 = vmatprep.subr.mxu0 0.0
    %653 = vmatpush1.msra.mxu0 0.0
    %654 = vmatprep.subr.mxu0 0.0
    %655 = vmatpush1.msra.mxu0 0.0
    %656 = vmatprep.subr.mxu0 0.0
    %657 = vmatpush1.msra.mxu0 0.0
    %658 = vmatprep.subr.mxu0 0.0
    %659 = vmatpush1.msra.mxu0 0.0
    %660 = vmatprep.subr.mxu0 0.0
    %661 = vmatpush1.msra.mxu0 0.0
    %662 = vmatprep.subr.mxu0 0.0
    %663 = vmatpush1.msra.mxu0 0.0
    %664 = vmatprep.subr.mxu0 0.0
    %665 = vmatpush1.msra.mxu0 0.0
    %666 = vmatprep.subr.mxu0 0.0
    %667 = vmatpush1.msra.mxu0 0.0
    %668 = vmatprep.subr.mxu0 0.0
    %669 = vmatpush1.msra.mxu0 0.0
    %670 = vmatprep.subr.mxu0 0.0
    %671 = vmatpush1.msra.mxu0 0.0
    %672 = vmatprep.subr.mxu0 0.0
    %673 = vmatpush1.msra.mxu0 0.0
    %674 = vmatprep.subr.mxu0 0.0
    %675 = vmatpush1.msra.mxu0 0.0
    %676 = vmatprep.subr.mxu0 0.0
    %677 = vmatpush1.msra.mxu0 0.0
    %678 = vmatprep.mubr.f32.mxu0 0.0
    %679 = vmatmul.mubr.f32.gmra.mrb[0].mxu0 %v612
    %v680 = vpop.f32.mrb[0].mxu0
    %v681 = vadd.f32 0.0, %v680
    %v682 = vpop.f32.mrb[0].mxu0
    %683 = vdwg.mxu0
    %v684 = vld [vmem:[#allocation2 + $0x108] sm:$0xff]
    %v685 = vld [vmem:[#allocation2 + $0x120] sm:$0xff]
    %v686 = vld [vmem:[#allocation2 + $0x138] sm:$0xff]
    %v687 = vld [vmem:[#allocation2 + $0x150] sm:$0xff]
    %v688 = vld [vmem:[#allocation2 + $0x168] sm:$0xff]
    %v689 = vld [vmem:[#allocation2 + $0x180] sm:$0xff]
    %v690 = vld [vmem:[#allocation2 + $0x198] sm:$0xff]
    %v691 = vld [vmem:[#allocation2 + $0x1b0] sm:$0xff]
    %v692 = vlaneseq
    %v693 = vshrl.u32 %v692, 7
    %v694 = vsub.s32 3, %v693
    %v695 = vrot.slane %v28, %v694
    %vm696 = vcmask 523264
    %v698 = vsel %vm696, %v681, 0
    %700 = vmatprep.subr.mxu0 0.0
    %701 = vmatpush1.msra.mxu0 %v684
    %702 = vmatprep.subr.mxu0 0.0
    %703 = vmatpush1.msra.mxu0 %v685
    %704 = vmatprep.subr.mxu0 0.0
    %705 = vmatpush1.msra.mxu0 %v686
    %706 = vmatprep.subr.mxu0 0.0
    %707 = vmatpush1.msra.mxu0 %v687
    %708 = vmatprep.subr.mxu0 0.0
    %709 = vmatpush1.msra.mxu0 %v688
    %710 = vmatprep.subr.mxu0 0.0
    %711 = vmatpush1.msra.mxu0 %v689
    %712 = vmatprep.subr.mxu0 0.0
    %713 = vmatpush1.msra.mxu0 %v690
    %714 = vmatprep.subr.mxu0 0.0
    %715 = vmatpush1.msra.mxu0 %v691
    %716 = vmatprep.subr.mxu0 0.0
    %717 = vmatpush1.msra.mxu0 0.0
    %718 = vmatprep.subr.mxu0 0.0
    %719 = vmatpush1.msra.mxu0 0.0
    %720 = vmatprep.subr.mxu0 0.0
    %721 = vmatpush1.msra.mxu0 0.0
    %722 = vmatprep.subr.mxu0 0.0
    %723 = vmatpush1.msra.mxu0 0.0
    %724 = vmatprep.subr.mxu0 0.0
    %725 = vmatpush1.msra.mxu0 0.0
    %726 = vmatprep.subr.mxu0 0.0
    %727 = vmatpush1.msra.mxu0 0.0
    %728 = vmatprep.subr.mxu0 0.0
    %729 = vmatpush1.msra.mxu0 0.0
    %730 = vmatprep.subr.mxu0 0.0
    %731 = vmatpush1.msra.mxu0 0.0
    %732 = vmatprep.subr.mxu0 0.0
    %733 = vmatpush1.msra.mxu0 0.0
    %734 = vmatprep.subr.mxu0 0.0
    %735 = vmatpush1.msra.mxu0 0.0
    %736 = vmatprep.subr.mxu0 0.0
    %737 = vmatpush1.msra.mxu0 0.0
    %738 = vmatprep.subr.mxu0 0.0
    %739 = vmatpush1.msra.mxu0 0.0
    %740 = vmatprep.subr.mxu0 0.0
    %741 = vmatpush1.msra.mxu0 0.0
    %742 = vmatprep.subr.mxu0 0.0
    %743 = vmatpush1.msra.mxu0 0.0
    %744 = vmatprep.subr.mxu0 0.0
    %745 = vmatpush1.msra.mxu0 0.0
    %746 = vmatprep.subr.mxu0 0.0
    %747 = vmatpush1.msra.mxu0 0.0
    %748 = vmatprep.subr.mxu0 0.0
    %749 = vmatpush1.msra.mxu0 0.0
    %750 = vmatprep.subr.mxu0 0.0
    %751 = vmatpush1.msra.mxu0 0.0
    %752 = vmatprep.subr.mxu0 0.0
    %753 = vmatpush1.msra.mxu0 0.0
    %754 = vmatprep.subr.mxu0 0.0
    %755 = vmatpush1.msra.mxu0 0.0
    %756 = vmatprep.subr.mxu0 0.0
    %757 = vmatpush1.msra.mxu0 0.0
    %758 = vmatprep.subr.mxu0 0.0
    %759 = vmatpush1.msra.mxu0 0.0
    %760 = vmatprep.subr.mxu0 0.0
    %761 = vmatpush1.msra.mxu0 0.0
    %762 = vmatprep.subr.mxu0 0.0
    %763 = vmatpush1.msra.mxu0 0.0
    %764 = vmatprep.mubr.f32.mxu0 0.0
    %765 = vmatmul.mubr.f32.gmra.mrb[0].mxu0 %v698
    %v766 = vpop.f32.mrb[0].mxu0
    %v767 = vadd.f32 %v695, %v766
    %v768 = vpop.f32.mrb[0].mxu0
    %769 = vdwg.mxu0
    %v770 = vmax.f32 %v767, 0.0
    %v771 = vld [vmem:[#allocation2 + $0x1c8] sm:$0xff]
    %v772 = vlaneseq
    %v773 = vshrl.u32 %v772, 7
    %v774 = vsub.s32 4, %v773
    %v775 = vrot.slane %v28, %v774
    %vm776 = vcmask 64512
    %v778 = vsel %vm776, %v770, 0
    %780 = vmatprep.subr.mxu0 0.0
    %781 = vmatpush1.msra.mxu0 %v771
    %782 = vmatprep.subr.mxu0 0.0
    %783 = vmatpush1.msra.mxu0 0.0
    %784 = vmatprep.subr.mxu0 0.0
    %785 = vmatpush1.msra.mxu0 0.0
    %786 = vmatprep.subr.mxu0 0.0
    %787 = vmatpush1.msra.mxu0 0.0
    %788 = vmatprep.subr.mxu0 0.0
    %789 = vmatpush1.msra.mxu0 0.0
    %790 = vmatprep.subr.mxu0 0.0
    %791 = vmatpush1.msra.mxu0 0.0
    %792 = vmatprep.subr.mxu0 0.0
    %793 = vmatpush1.msra.mxu0 0.0
    %794 = vmatprep.subr.mxu0 0.0
    %795 = vmatpush1.msra.mxu0 0.0
    %796 = vmatprep.subr.mxu0 0.0
    %797 = vmatpush1.msra.mxu0 0.0
    %798 = vmatprep.subr.mxu0 0.0
    %799 = vmatpush1.msra.mxu0 0.0
    %800 = vmatprep.subr.mxu0 0.0
    %801 = vmatpush1.msra.mxu0 0.0
    %802 = vmatprep.subr.mxu0 0.0
    %803 = vmatpush1.msra.mxu0 0.0
    %804 = vmatprep.subr.mxu0 0.0
    %805 = vmatpush1.msra.mxu0 0.0
    %806 = vmatprep.subr.mxu0 0.0
    %807 = vmatpush1.msra.mxu0 0.0
    %808 = vmatprep.subr.mxu0 0.0
    %809 = vmatpush1.msra.mxu0 0.0
    %810 = vmatprep.subr.mxu0 0.0
    %811 = vmatpush1.msra.mxu0 0.0
    %812 = vmatprep.subr.mxu0 0.0
    %813 = vmatpush1.msra.mxu0 0.0
    %814 = vmatprep.subr.mxu0 0.0
    %815 = vmatpush1.msra.mxu0 0.0
    %816 = vmatprep.subr.mxu0 0.0
    %817 = vmatpush1.msra.mxu0 0.0
    %818 = vmatprep.subr.mxu0 0.0
    %819 = vmatpush1.msra.mxu0 0.0
    %820 = vmatprep.subr.mxu0 0.0
    %821 = vmatpush1.msra.mxu0 0.0
    %822 = vmatprep.subr.mxu0 0.0
    %823 = vmatpush1.msra.mxu0 0.0
    %824 = vmatprep.subr.mxu0 0.0
    %825 = vmatpush1.msra.mxu0 0.0
    %826 = vmatprep.subr.mxu0 0.0
    %827 = vmatpush1.msra.mxu0 0.0
    %828 = vmatprep.subr.mxu0 0.0
    %829 = vmatpush1.msra.mxu0 0.0
    %830 = vmatprep.subr.mxu0 0.0
    %831 = vmatpush1.msra.mxu0 0.0
    %832 = vmatprep.subr.mxu0 0.0
    %833 = vmatpush1.msra.mxu0 0.0
    %834 = vmatprep.subr.mxu0 0.0
    %835 = vmatpush1.msra.mxu0 0.0
    %836 = vmatprep.subr.mxu0 0.0
    %837 = vmatpush1.msra.mxu0 0.0
    %838 = vmatprep.subr.mxu0 0.0
    %839 = vmatpush1.msra.mxu0 0.0
    %840 = vmatprep.subr.mxu0 0.0
    %841 = vmatpush1.msra.mxu0 0.0
    %842 = vmatprep.subr.mxu0 0.0
    %843 = vmatpush1.msra.mxu0 0.0
    %844 = vmatprep.mubr.f32.mxu0 0.0
    %845 = vmatmul.mubr.f32.gmra.mrb[0].mxu0 %v778
    %v846 = vpop.f32.mrb[0].mxu0
    %v847 = vadd.f32 %v775, %v846
    %v848 = vpop.f32.mrb[0].mxu0
    %849 = vdwg.mxu0
    %v850 = vmax.f32 %v847, 0.0
    %v851 = vld [vmem:[#allocation2 + $0x1e0] sm:$0xff]
    %v852 = vlaneseq
    %v853 = vshrl.u32 %v852, 7
    %v854 = vsub.s32 5, %v853
    %v855 = vrot.slane %v28, %v854
    %v857 = vsel %vm776, %v850, 0
    %859 = vmatprep.subr.mxu0 0.0
    %860 = vmatpush1.msra.mxu0 %v851
    %861 = vmatprep.subr.mxu0 0.0
    %862 = vmatpush1.msra.mxu0 0.0
    %863 = vmatprep.subr.mxu0 0.0
    %864 = vmatpush1.msra.mxu0 0.0
    %865 = vmatprep.subr.mxu0 0.0
    %866 = vmatpush1.msra.mxu0 0.0
    %867 = vmatprep.subr.mxu0 0.0
    %868 = vmatpush1.msra.mxu0 0.0
    %869 = vmatprep.subr.mxu0 0.0
    %870 = vmatpush1.msra.mxu0 0.0
    %871 = vmatprep.subr.mxu0 0.0
    %872 = vmatpush1.msra.mxu0 0.0
    %873 = vmatprep.subr.mxu0 0.0
    %874 = vmatpush1.msra.mxu0 0.0
    %875 = vmatprep.subr.mxu0 0.0
    %876 = vmatpush1.msra.mxu0 0.0
    %877 = vmatprep.subr.mxu0 0.0
    %878 = vmatpush1.msra.mxu0 0.0
    %879 = vmatprep.subr.mxu0 0.0
    %880 = vmatpush1.msra.mxu0 0.0
    %881 = vmatprep.subr.mxu0 0.0
    %882 = vmatpush1.msra.mxu0 0.0
    %883 = vmatprep.subr.mxu0 0.0
    %884 = vmatpush1.msra.mxu0 0.0
    %885 = vmatprep.subr.mxu0 0.0
    %886 = vmatpush1.msra.mxu0 0.0
    %887 = vmatprep.subr.mxu0 0.0
    %888 = vmatpush1.msra.mxu0 0.0
    %889 = vmatprep.subr.mxu0 0.0
    %890 = vmatpush1.msra.mxu0 0.0
    %891 = vmatprep.subr.mxu0 0.0
    %892 = vmatpush1.msra.mxu0 0.0
    %893 = vmatprep.subr.mxu0 0.0
    %894 = vmatpush1.msra.mxu0 0.0
    %895 = vmatprep.subr.mxu0 0.0
    %896 = vmatpush1.msra.mxu0 0.0
    %897 = vmatprep.subr.mxu0 0.0
    %898 = vmatpush1.msra.mxu0 0.0
    %899 = vmatprep.subr.mxu0 0.0
    %900 = vmatpush1.msra.mxu0 0.0
    %901 = vmatprep.subr.mxu0 0.0
    %902 = vmatpush1.msra.mxu0 0.0
    %903 = vmatprep.subr.mxu0 0.0
    %904 = vmatpush1.msra.mxu0 0.0
    %905 = vmatprep.subr.mxu0 0.0
    %906 = vmatpush1.msra.mxu0 0.0
    %907 = vmatprep.subr.mxu0 0.0
    %908 = vmatpush1.msra.mxu0 0.0
    %909 = vmatprep.subr.mxu0 0.0
    %910 = vmatpush1.msra.mxu0 0.0
    %911 = vmatprep.subr.mxu0 0.0
    %912 = vmatpush1.msra.mxu0 0.0
    %913 = vmatprep.subr.mxu0 0.0
    %914 = vmatpush1.msra.mxu0 0.0
    %915 = vmatprep.subr.mxu0 0.0
    %916 = vmatpush1.msra.mxu0 0.0
    %917 = vmatprep.subr.mxu0 0.0
    %918 = vmatpush1.msra.mxu0 0.0
    %919 = vmatprep.subr.mxu0 0.0
    %920 = vmatpush1.msra.mxu0 0.0
    %921 = vmatprep.subr.mxu0 0.0
    %922 = vmatpush1.msra.mxu0 0.0
    %923 = vmatprep.mubr.f32.mxu0 0.0
    %924 = vmatmul.mubr.f32.gmra.mrb[0].mxu0 %v857
    %v925 = vpop.f32.mrb[0].mxu0
    %v926 = vadd.f32 %v855, %v925
    %v927 = vpop.f32.mrb[0].mxu0
    %928 = vdwg.mxu0
    %929 = vmax.xlane.f32.xlu0 %v926
    %v930 = vpop.xlane.xlu0 %929
    %v931 = vsub.f32 %v926, %v930
    %v932 = vmul.f32 %v931, 1.442695
    %v933 = vpow.pop %v932
    %934 = vadd.xlane.f32.xlu0 %v933
    %v935 = vpop.xlane.xlu0 %934
    %v936 = vrcp.pop %v935
    %v937 = vmul.f32 %v933, %v936
    %938 = vst [vmem:[#allocation5] sm:$0xff] %v937
    // Predicated region
    $region14: #{tpu_custom_call.1} parent=1 // pred_check
      _
    $region15: #{tpu_custom_call.1} parent=1 // pred_check_branch
      %940 = sbr.rel (0) target = $region17
    $region16: #{tpu_custom_call.1} parent=1 // pred_region
      %s942 = ssub.s32 128, 128
      %943 = vsyncadd [#allocation4], %s942
      %s945 = sshll.u32 [#allocation5], 4
      %s946 = int_to_ptr.vmem [resolvable:$true] %s945
      %948 = dma.vmem_to_hbm [thread:$0]  %s946, 128, %s2, [#allocation4]
    $region17: #{tpu_custom_call.1} parent=1 // pred_fallthru
      _
    // Predicated region
    $region18: #{tpu_custom_call.1} parent=1 // pred_check
      _
    $region19: #{tpu_custom_call.1} parent=1 // pred_check_branch
      %950 = sbr.rel (0) target = $region21
    $region20: #{tpu_custom_call.1} parent=1 // pred_region
      %951 = dma.done [#allocation4], 128
    $region21: #{tpu_custom_call.1} parent=1 // pred_fallthru
      _
    %952 = vsyncpa [#allocation3], 1
    %953 = vsyncpa [#allocation4], 1

</llo_original>
